<compile_context>
chip_gen: v7x
topology: tpu7x:2x2x1
jax: 0.10.0
libtpu: 0.0.40
codegen_flags: <defaults>
</compile_context>

<pallas_src>
import functools

import jax
import jax.numpy as jnp
from jax.experimental import pallas as pl
from jax.experimental.pallas import tpu as pltpu


_TARGET_BLOCK_BYTES = 4 * 1024 * 1024  # ~4 MiB per block (v7x-safe, near roofline)


def _backflip_kernel(x_ref, o_ref, *, bnd_low, bnd_up):
    """Elementwise bound restoration: two threshold set-backs then a clamp."""
    x = x_ref[...]
    thres_huge = jnp.float32((2.0 ** 64) * bnd_up)
    thres_two = jnp.float32(2.0 * bnd_up)
    x = jnp.where(x >= thres_huge, jnp.float32(0.0), x)
    x = jnp.where(x >= thres_two, jnp.float32(2.0), x)
    x = jnp.minimum(jnp.maximum(x, jnp.float32(bnd_low)), jnp.float32(bnd_up))
    o_ref[...] = x


def _run_backflip(x, bnd_low, bnd_up):
    """pallas_call on the original array shape; tiles only the leading axis."""
    n0 = x.shape[0]
    inner_shape = x.shape[1:]
    itemsize = jnp.dtype(x.dtype).itemsize
    inner_bytes = max(1, (x.size // max(n0, 1)) * itemsize)

    # Largest leading-axis tile that keeps one block <= ~4 MiB.
    tile0 = max(1, min(n0, _TARGET_BLOCK_BYTES // inner_bytes))
    if x.ndim == 2 and tile0 < n0:
        # Tiled axis is then the second-to-last dim: keep it a sublane multiple
        # so the (8, 128) block rule holds (this path only runs for float32).
        tile0 = max(8, (tile0 // 8) * 8)
    grid0 = pl.cdiv(n0, tile0)  # ragged tail handled by Pallas masking

    block_shape = (tile0,) + inner_shape
    ndim = x.ndim
    index_map = lambda i: (i,) + (0,) * (ndim - 1)

    kernel = functools.partial(_backflip_kernel, bnd_low=bnd_low, bnd_up=bnd_up)

    return pl.pallas_call(
        kernel,
        out_shape=jax.ShapeDtypeStruct(x.shape, x.dtype),
        grid_spec=pltpu.PrefetchScalarGridSpec(
            num_scalar_prefetch=0,
            grid=(grid0,),
            in_specs=[pl.BlockSpec(block_shape, index_map)],
            out_specs=pl.BlockSpec(block_shape, index_map),
        ),
        compiler_params=pltpu.CompilerParams(
            dimension_semantics=("parallel",)),
        cost_estimate=pl.CostEstimate(
            flops=5 * x.size,
            transcendentals=0,
            bytes_accessed=2 * x.size * itemsize),
    )(x)


def ranger_backflip_forward(x, bnds=None):
    """Pallas equivalent of Ranger_BackFlip.forward."""
    # Identity fast paths -- mirror the PyTorch guards.  Per the perf review,
    # a true identity launches no kernel and issues no copy.
    if bnds is None:
        return x
    bnds = list(bnds)
    if len(bnds) < 2 or (bnds[0] is None and bnds[1] is None):
        return x
    if x.dtype != jnp.float32:
        # The torch module only acts on (cuda.)FloatTensor; other dtypes pass through.
        return x

    bnd_low = float(bnds[0])
    bnd_up = float(bnds[1])

    if x.ndim >= 2:
        return _run_backflip(x, bnd_low, bnd_up)
    # Rank-0/1 inputs: present a tiny 2D view (negligible cost).
    return _run_backflip(x.reshape(1, -1), bnd_low, bnd_up).reshape(x.shape)


def _reference(x, bnd_low, bnd_up):
    t1 = jnp.float32((2.0 ** 64) * bnd_up)
    t2 = jnp.float32(2.0 * bnd_up)
    x = jnp.where(x >= t1, jnp.float32(0.0), x)
    x = jnp.where(x >= t2, jnp.float32(2.0), x)
    return jnp.clip(x, jnp.float32(bnd_low), jnp.float32(bnd_up))


if __name__ == "__main__":
    key = jax.random.PRNGKey(0)
    x = jax.random.normal(key, (2, 4, 16, 16), dtype=jnp.float32)  # NCHW
    # Inject faults so every branch (huge set-back, 2x set-back, clamp) fires.
    x = x.at[0, 0, 0, 0].set(1e30)    # >= 2**64 * bnd_up -> 0.0
    x = x.at[0, 1, 2, 3].set(100.0)   # >= 2    * bnd_up  -> 2.0
    x = x.at[1, 3, 7, 7].set(-50.0)   # below bnd_low     -> clamped

    bnds = (-2.0, 4.0)

    y = ranger_backflip_forward(x, bnds=bnds)
    y = jax.block_until_ready(y)

    assert y.shape == x.shape and y.dtype == x.dtype
    y_ref = _reference(x, *bnds)
    assert bool(jnp.all(y == y_ref)), "mismatch vs reference"

    # Identity path (no bounds): must be a free pass-through.
    y_id = ranger_backflip_forward(x, bnds=None)
    assert y_id is x

    print("KERNEL_OK")
</pallas_src>

<mosaic_0001>
module attributes {stable_mosaic.version = 11 : i64} {
  func.func @_backflip_kernel(%arg0: i32, %arg1: memref<2x4x16x16xf32, #tpu.memory_space<vmem>>, %arg2: memref<2x4x16x16xf32, #tpu.memory_space<vmem>>) attributes {dimension_semantics = [#tpu.dimension_semantics<parallel>], iteration_bounds = array<i64: 1>, scalar_prefetch = 0 : i64, scratch_operands = 0 : i64, tpu.core_type = #tpu.core_type<tc>, window_params = [{transform_indices = @transform_0, window_bounds = array<i64: 2, 4, 16, 16>}, {transform_indices = @transform_1, window_bounds = array<i64: 2, 4, 16, 16>}]} {
    %c0 = arith.constant 0 : index
    %c0_0 = arith.constant 0 : index
    %c0_1 = arith.constant 0 : index
    %c0_2 = arith.constant 0 : index
    %0 = vector.load %arg1[%c0, %c0_0, %c0_1, %c0_2] : memref<2x4x16x16xf32, #tpu.memory_space<vmem>>, vector<2x4x16x16xf32>
    %cst = arith.constant 7.37869762E+19 : f32
    %1 = vector.broadcast %cst : f32 to vector<2x4x16x16xf32>
    %2 = arith.cmpf oge, %0, %1 : vector<2x4x16x16xf32>
    %cst_3 = arith.constant 0.000000e+00 : f32
    %3 = vector.broadcast %cst_3 : f32 to vector<2x4x16x16xf32>
    %4 = arith.select %2, %3, %0 : vector<2x4x16x16xi1>, vector<2x4x16x16xf32>
    %cst_4 = arith.constant 8.000000e+00 : f32
    %5 = vector.broadcast %cst_4 : f32 to vector<2x4x16x16xf32>
    %6 = arith.cmpf oge, %4, %5 : vector<2x4x16x16xf32>
    %cst_5 = arith.constant 2.000000e+00 : f32
    %7 = vector.broadcast %cst_5 : f32 to vector<2x4x16x16xf32>
    %8 = arith.select %6, %7, %4 : vector<2x4x16x16xi1>, vector<2x4x16x16xf32>
    %cst_6 = arith.constant -2.000000e+00 : f32
    %9 = vector.broadcast %cst_6 : f32 to vector<2x4x16x16xf32>
    %10 = arith.maximumf %8, %9 : vector<2x4x16x16xf32>
    %cst_7 = arith.constant 4.000000e+00 : f32
    %11 = vector.broadcast %cst_7 : f32 to vector<2x4x16x16xf32>
    %12 = arith.minimumf %10, %11 : vector<2x4x16x16xf32>
    %c0_8 = arith.constant 0 : index
    %c0_9 = arith.constant 0 : index
    %c0_10 = arith.constant 0 : index
    %c0_11 = arith.constant 0 : index
    %13 = vector.load %arg2[%c0_8, %c0_9, %c0_10, %c0_11] : memref<2x4x16x16xf32, #tpu.memory_space<vmem>>, vector<2x4x16x16xf32>
    tpu.vector_store %arg2[%c0_8, %c0_9, %c0_10, %c0_11], %12 {strides = array<i32>} : memref<2x4x16x16xf32, #tpu.memory_space<vmem>>, vector<2x4x16x16xf32>,
    return
  }
  func.func @transform_0(%arg0: i32) -> (i32, i32, i32, i32) {
    %c0_i32 = arith.constant 0 : i32
    %c0_i32_0 = arith.constant 0 : i32
    %c0_i32_1 = arith.constant 0 : i32
    %c0_i32_2 = arith.constant 0 : i32
    return %arg0, %c0_i32, %c0_i32_0, %c0_i32_1 : i32, i32, i32, i32
  }
  func.func @transform_1(%arg0: i32) -> (i32, i32, i32, i32) {
    %c0_i32 = arith.constant 0 : i32
    %c0_i32_0 = arith.constant 0 : i32
    %c0_i32_1 = arith.constant 0 : i32
    %c0_i32_2 = arith.constant 0 : i32
    return %arg0, %c0_i32, %c0_i32_0, %c0_i32_1 : i32, i32, i32, i32
  }
}

</mosaic_0001>

<llo_original>
// kernel: tpu_custom_call.1
$region0: #{tpu_custom_call.1}
  #allocation0 [shape = 'u32[]', space=smem, size = 0x4, offset = 0x4, fixed_abs, tag = 'smem constant byte address 0x4 - core index']
  #allocation1 [shape = 'u32[144,128]{1,0:T(1,128)}', space=vmem, size = 0x12000, scoped, tag = 'internal scratch']
  %s0 = inlined_call_operand.hbm [shape: f32[2,4,16,16], index: 0, kind: input, shape index: {}]
  %s1 = inlined_call_operand.hbm [shape: f32[2,4,16,16], index: 1, kind: output, shape index: {}]
  %s2 = sld [smem:[#allocation0]]
  $region18: #{tpu_custom_call.1} parent=0
    _
  %s4 = ssub.s32 1, %s2
  %s5 = scalar_select 0, %s4, %s2
  $region1: #{tpu_custom_call.1} parent=0
    #allocation2 [shape = 'u8[65536]{0}', space=vmem, size = 0x10000, scoped, tag = 'input window, operand 0, single buffered']
    #allocation3 [shape = 's32[1]{0}', space=sflag, size = 0x4, scoped, tag = 'scoped memory for tpu_custom_call.1']
    #allocation4 [shape = 's32[1]{0}', space=sflag, size = 0x4, scoped, tag = 'scoped memory for tpu_custom_call.1']
    #allocation5 [shape = 'u8[65536]{0}', space=vmem, size = 0x10000, scoped, tag = 'output window, operand 0, single buffered']
    %6 = vsyncpa [#allocation3], 0
    %7 = vsyncpa [#allocation4], 0
    // Predicated region
    $region2: #{tpu_custom_call.1} parent=1 // pred_check
      _
    $region3: #{tpu_custom_call.1} parent=1 // pred_check_branch
      %9 = sbr.rel (0) target = $region5
    $region4: #{tpu_custom_call.1} parent=1 // pred_region
      %s11 = ssub.s32 2048, 2048
      %12 = vsyncadd [#allocation3], %s11
      %s13 = sshll.u32 [#allocation2], 4
      %s14 = int_to_ptr.vmem [resolvable:$true] %s13
      %19 = dma.hbm_to_vmem [thread:$0]  %s0, 2048, %s14, [#allocation3], 128, 128, 8
    $region5: #{tpu_custom_call.1} parent=1 // pred_fallthru
      _
    // Predicated region
    $region6: #{tpu_custom_call.1} parent=1 // pred_check
      _
    $region7: #{tpu_custom_call.1} parent=1 // pred_check_branch
      %21 = sbr.rel (0) target = $region9
    $region8: #{tpu_custom_call.1} parent=1 // pred_region
      %22 = dma.done [#allocation3], 2048
    $region9: #{tpu_custom_call.1} parent=1 // pred_fallthru
      _
    %v23 = vld [vmem:[#allocation2] sm:$0xff]
    %v24 = vld [vmem:[#allocation2 + $0x8] sm:$0xff]
    %v25 = vld [vmem:[#allocation2 + $0x10] sm:$0xff]
    %v26 = vld [vmem:[#allocation2 + $0x18] sm:$0xff]
    %v27 = vld [vmem:[#allocation2 + $0x20] sm:$0xff]
    %v28 = vld [vmem:[#allocation2 + $0x28] sm:$0xff]
    %v29 = vld [vmem:[#allocation2 + $0x30] sm:$0xff]
    %v30 = vld [vmem:[#allocation2 + $0x38] sm:$0xff]
    %v31 = vld [vmem:[#allocation2 + $0x40] sm:$0xff]
    %v32 = vld [vmem:[#allocation2 + $0x48] sm:$0xff]
    %v33 = vld [vmem:[#allocation2 + $0x50] sm:$0xff]
    %v34 = vld [vmem:[#allocation2 + $0x58] sm:$0xff]
    %v35 = vld [vmem:[#allocation2 + $0x60] sm:$0xff]
    %v36 = vld [vmem:[#allocation2 + $0x68] sm:$0xff]
    %v37 = vld [vmem:[#allocation2 + $0x70] sm:$0xff]
    %v38 = vld [vmem:[#allocation2 + $0x78] sm:$0xff]
    %vm39 = vcmp.ge.f32.partialorder %v23, 7.3786976e+19
    %vm40 = vcmp.ge.f32.partialorder %v24, 7.3786976e+19
    %vm41 = vcmp.ge.f32.partialorder %v25, 7.3786976e+19
    %vm42 = vcmp.ge.f32.partialorder %v26, 7.3786976e+19
    %vm43 = vcmp.ge.f32.partialorder %v27, 7.3786976e+19
    %vm44 = vcmp.ge.f32.partialorder %v28, 7.3786976e+19
    %vm45 = vcmp.ge.f32.partialorder %v29, 7.3786976e+19
    %vm46 = vcmp.ge.f32.partialorder %v30, 7.3786976e+19
    %vm47 = vcmp.ge.f32.partialorder %v31, 7.3786976e+19
    %vm48 = vcmp.ge.f32.partialorder %v32, 7.3786976e+19
    %vm49 = vcmp.ge.f32.partialorder %v33, 7.3786976e+19
    %vm50 = vcmp.ge.f32.partialorder %v34, 7.3786976e+19
    %vm51 = vcmp.ge.f32.partialorder %v35, 7.3786976e+19
    %vm52 = vcmp.ge.f32.partialorder %v36, 7.3786976e+19
    %vm53 = vcmp.ge.f32.partialorder %v37, 7.3786976e+19
    %vm54 = vcmp.ge.f32.partialorder %v38, 7.3786976e+19
    %v55 = vsel %vm39, 0.0, %v23
    %v56 = vsel %vm40, 0.0, %v24
    %v57 = vsel %vm41, 0.0, %v25
    %v58 = vsel %vm42, 0.0, %v26
    %v59 = vsel %vm43, 0.0, %v27
    %v60 = vsel %vm44, 0.0, %v28
    %v61 = vsel %vm45, 0.0, %v29
    %v62 = vsel %vm46, 0.0, %v30
    %v63 = vsel %vm47, 0.0, %v31
    %v64 = vsel %vm48, 0.0, %v32
    %v65 = vsel %vm49, 0.0, %v33
    %v66 = vsel %vm50, 0.0, %v34
    %v67 = vsel %vm51, 0.0, %v35
    %v68 = vsel %vm52, 0.0, %v36
    %v69 = vsel %vm53, 0.0, %v37
    %v70 = vsel %vm54, 0.0, %v38
    %vm71 = vcmp.ge.f32.partialorder %v55, 8.0
    %vm72 = vcmp.ge.f32.partialorder %v56, 8.0
    %vm73 = vcmp.ge.f32.partialorder %v57, 8.0
    %vm74 = vcmp.ge.f32.partialorder %v58, 8.0
    %vm75 = vcmp.ge.f32.partialorder %v59, 8.0
    %vm76 = vcmp.ge.f32.partialorder %v60, 8.0
    %vm77 = vcmp.ge.f32.partialorder %v61, 8.0
    %vm78 = vcmp.ge.f32.partialorder %v62, 8.0
    %vm79 = vcmp.ge.f32.partialorder %v63, 8.0
    %vm80 = vcmp.ge.f32.partialorder %v64, 8.0
    %vm81 = vcmp.ge.f32.partialorder %v65, 8.0
    %vm82 = vcmp.ge.f32.partialorder %v66, 8.0
    %vm83 = vcmp.ge.f32.partialorder %v67, 8.0
    %vm84 = vcmp.ge.f32.partialorder %v68, 8.0
    %vm85 = vcmp.ge.f32.partialorder %v69, 8.0
    %vm86 = vcmp.ge.f32.partialorder %v70, 8.0
    %v87 = vsel %vm71, 2.0, %v55
    %v88 = vsel %vm72, 2.0, %v56
    %v89 = vsel %vm73, 2.0, %v57
    %v90 = vsel %vm74, 2.0, %v58
    %v91 = vsel %vm75, 2.0, %v59
    %v92 = vsel %vm76, 2.0, %v60
    %v93 = vsel %vm77, 2.0, %v61
    %v94 = vsel %vm78, 2.0, %v62
    %v95 = vsel %vm79, 2.0, %v63
    %v96 = vsel %vm80, 2.0, %v64
    %v97 = vsel %vm81, 2.0, %v65
    %v98 = vsel %vm82, 2.0, %v66
    %v99 = vsel %vm83, 2.0, %v67
    %v100 = vsel %vm84, 2.0, %v68
    %v101 = vsel %vm85, 2.0, %v69
    %v102 = vsel %vm86, 2.0, %v70
    %v103 = vmax.f32 %v87, -2.0
    %v104 = vmax.f32 %v88, -2.0
    %v105 = vmax.f32 %v89, -2.0
    %v106 = vmax.f32 %v90, -2.0
    %v107 = vmax.f32 %v91, -2.0
    %v108 = vmax.f32 %v92, -2.0
    %v109 = vmax.f32 %v93, -2.0
    %v110 = vmax.f32 %v94, -2.0
    %v111 = vmax.f32 %v95, -2.0
    %v112 = vmax.f32 %v96, -2.0
    %v113 = vmax.f32 %v97, -2.0
    %v114 = vmax.f32 %v98, -2.0
    %v115 = vmax.f32 %v99, -2.0
    %v116 = vmax.f32 %v100, -2.0
    %v117 = vmax.f32 %v101, -2.0
    %v118 = vmax.f32 %v102, -2.0
    %v119 = vmin.f32 %v103, 4.0
    %v120 = vmin.f32 %v104, 4.0
    %v121 = vmin.f32 %v105, 4.0
    %v122 = vmin.f32 %v106, 4.0
    %v123 = vmin.f32 %v107, 4.0
    %v124 = vmin.f32 %v108, 4.0
    %v125 = vmin.f32 %v109, 4.0
    %v126 = vmin.f32 %v110, 4.0
    %v127 = vmin.f32 %v111, 4.0
    %v128 = vmin.f32 %v112, 4.0
    %v129 = vmin.f32 %v113, 4.0
    %v130 = vmin.f32 %v114, 4.0
    %v131 = vmin.f32 %v115, 4.0
    %v132 = vmin.f32 %v116, 4.0
    %v133 = vmin.f32 %v117, 4.0
    %v134 = vmin.f32 %v118, 4.0
    %vm135 = vcmask 130048
    %136 = vst.msk [vmem:[#allocation5] sm:$0xff] %vm135, %v119
    %137 = vst.msk [vmem:[#allocation5 + $0x8] sm:$0xff] %vm135, %v120
    %138 = vst.msk [vmem:[#allocation5 + $0x10] sm:$0xff] %vm135, %v121
    %139 = vst.msk [vmem:[#allocation5 + $0x18] sm:$0xff] %vm135, %v122
    %140 = vst.msk [vmem:[#allocation5 + $0x20] sm:$0xff] %vm135, %v123
    %141 = vst.msk [vmem:[#allocation5 + $0x28] sm:$0xff] %vm135, %v124
    %142 = vst.msk [vmem:[#allocation5 + $0x30] sm:$0xff] %vm135, %v125
    %143 = vst.msk [vmem:[#allocation5 + $0x38] sm:$0xff] %vm135, %v126
    %144 = vst.msk [vmem:[#allocation5 + $0x40] sm:$0xff] %vm135, %v127
    %145 = vst.msk [vmem:[#allocation5 + $0x48] sm:$0xff] %vm135, %v128
    %146 = vst.msk [vmem:[#allocation5 + $0x50] sm:$0xff] %vm135, %v129
    %147 = vst.msk [vmem:[#allocation5 + $0x58] sm:$0xff] %vm135, %v130
    %148 = vst.msk [vmem:[#allocation5 + $0x60] sm:$0xff] %vm135, %v131
    %149 = vst.msk [vmem:[#allocation5 + $0x68] sm:$0xff] %vm135, %v132
    %150 = vst.msk [vmem:[#allocation5 + $0x70] sm:$0xff] %vm135, %v133
    %151 = vst.msk [vmem:[#allocation5 + $0x78] sm:$0xff] %vm135, %v134
    // Predicated region
    $region10: #{tpu_custom_call.1} parent=1 // pred_check
      _
    $region11: #{tpu_custom_call.1} parent=1 // pred_check_branch
      %153 = sbr.rel (0) target = $region13
    $region12: #{tpu_custom_call.1} parent=1 // pred_region
      %s155 = ssub.s32 2048, 2048
      %156 = vsyncadd [#allocation4], %s155
      %s157 = sshll.u32 [#allocation5], 4
      %s158 = int_to_ptr.vmem [resolvable:$true] %s157
      %163 = dma.vmem_to_hbm [thread:$0]  %s158, 2048, %s1, [#allocation4], 128, 128, 8
    $region13: #{tpu_custom_call.1} parent=1 // pred_fallthru
      _
    // Predicated region
    $region14: #{tpu_custom_call.1} parent=1 // pred_check
      _
    $region15: #{tpu_custom_call.1} parent=1 // pred_check_branch
      %165 = sbr.rel (0) target = $region17
    $region16: #{tpu_custom_call.1} parent=1 // pred_region
      %166 = dma.done [#allocation4], 2048
    $region17: #{tpu_custom_call.1} parent=1 // pred_fallthru
      _
    %167 = vsyncpa [#allocation3], 1
    %168 = vsyncpa [#allocation4], 1

</llo_original>
